<compile_context>
chip_gen: v6e
topology: v6e:2x2x1
jax: 0.10.0
libtpu: 0.0.40
codegen_flags: <defaults>
</compile_context>

<pallas_src>
import jax
import jax.numpy as jnp
from jax.experimental import pallas as pl
from jax.experimental.pallas import tpu as pltpu  # noqa: F401  (TPU backend)

NEG_SLOPE = 0.01      # F.leaky_relu default negative_slope
K_PAD = 64            # padded contraction width (max fan_in over the 4 layers)
F_PAD = 128           # lane-padded feature width (one full lane tile)
NUM_LAYERS = 4


def _leaky_relu(x):
    return jnp.where(x > 0, x, NEG_SLOPE * x)


def gcn2_kernel(a_ref, w_ref, v_ref, o_ref):
    """Whole DummyGCN2 forward in one kernel (single grid point, all operands in VMEM).

    a_ref: (N, N)        normalized adjacency (norm='both' folded in)
    w_ref: (4, 64, 128)  zero-padded weights, W_l in [l, :fan_in_l, :fan_out_l]
    v_ref: (8, 128)      rows 0..3 = zero-padded biases b0..b3,
                         row 4 lanes 0..N-1 = in_feat^T, everything else zero
    o_ref: (1, 128)      lane 0 = leaky_relu(conv3(...))[node 1]; other lanes are zero padding
    """
    n = a_ref.shape[0]
    a = a_ref[...]                                   # (N, N)
    vecs = v_ref[...]                                # (8, 128)

    b0, b1, b2, b3 = (vecs[l:l + 1, :] for l in range(NUM_LAYERS))   # (1, 128) each
    feat = vecs[4:5, :n]                             # (1, N) == in_feat^T

    # ---- layer 0 (1 -> h1): aggregate-then-project (valid because norm='both' is
    # folded into A), projection done as a VPU broadcast multiply (no K=1 MXU matmul).
    agg0 = jnp.sum(a * feat, axis=1, keepdims=True)                  # (N, 1) == A @ in_feat
    w0_row = w_ref[0][0:1, :]                                        # (1, 128) == W0 zero-padded
    h = _leaky_relu(agg0 * w0_row + b0)                              # (N, 128), valid lanes [:h1]

    # ---- layers 1, 2: project then aggregate (same order as the reference).
    # Zero padding in h / W keeps the padded lanes exactly zero throughout.
    def conv(h, w, b):
        xw = jnp.dot(h[:, :K_PAD], w, preferred_element_type=jnp.float32)   # (N, 128)
        ag = jnp.dot(a, xw, preferred_element_type=jnp.float32)             # (N, 128)
        return _leaky_relu(ag + b)

    h = conv(h, w_ref[1], b1)
    h = conv(h, w_ref[2], b2)

    # ---- layer 3 (h3 -> 1): only node 1 is consumed downstream, so aggregate just
    # row 1 of A; the output store is a single lane-dense row instead of (N, 1).
    xw3 = jnp.dot(h[:, :K_PAD], w_ref[3], preferred_element_type=jnp.float32)   # (N, 128)
    row1 = jnp.dot(a[1:2, :], xw3, preferred_element_type=jnp.float32)          # (1, 128)
    o_ref[...] = _leaky_relu(row1 + b3)


def _full_spec(shape):
    # Full-array block (block_shape == array shape satisfies the (8,128) rule).
    return pl.BlockSpec(shape, lambda *_: (0,) * len(shape))


def pack_inputs(a_norm, in_feat, params):
    """Pack weights / biases / input features into two zero-padded, aligned slabs."""
    n = a_norm.shape[0]
    w_slab = jnp.zeros((NUM_LAYERS, K_PAD, F_PAD), jnp.float32)
    v_slab = jnp.zeros((8, F_PAD), jnp.float32)
    for l, (w, b) in enumerate(params):
        assert w.shape[0] <= K_PAD and w.shape[1] <= F_PAD and b.shape[0] <= F_PAD
        w_slab = w_slab.at[l, :w.shape[0], :w.shape[1]].set(w.astype(jnp.float32))
        v_slab = v_slab.at[l, :b.shape[0]].set(b.astype(jnp.float32))
    v_slab = v_slab.at[4, :n].set(in_feat.reshape(-1).astype(jnp.float32))
    return a_norm.astype(jnp.float32), w_slab, v_slab


def dummy_gcn2_forward(a_norm, in_feat, params):
    """params = [(W0,b0),...,(W3,b3)]; returns leaky_relu(conv stack)[node 1], shape (1,)."""
    a, w_slab, v_slab = pack_inputs(a_norm, in_feat, params)
    out = pl.pallas_call(
        gcn2_kernel,
        out_shape=jax.ShapeDtypeStruct((1, F_PAD), jnp.float32),
        in_specs=[_full_spec(a.shape),
                  _full_spec(w_slab.shape),
                  _full_spec(v_slab.shape)],
        out_specs=_full_spec((1, F_PAD)),
    )(a, w_slab, v_slab)
    return out[0, :1]      # node-1 scalar as shape (1,), matching the reference


# ---------------------------------------------------------------------------
# Plain-JAX glue: graph construction / normalization / parameter init / reference
# ---------------------------------------------------------------------------

def build_norm_adj(key, n):
    """Random symmetric graph (no self loops), DGL norm='both' normalization."""
    p = jax.random.uniform(key, (n, n))
    a = (p < 0.35).astype(jnp.float32)
    a = jnp.maximum(a, a.T)                            # undirected
    a = a * (1.0 - jnp.eye(n, dtype=jnp.float32))
    deg = jnp.clip(jnp.sum(a, axis=1), 1.0, None)      # degree clamp like DGL
    d_inv_sqrt = 1.0 / jnp.sqrt(deg)
    return (d_inv_sqrt[:, None] * a) * d_inv_sqrt[None, :]


def init_params(key, dims):
    """Xavier-uniform weights, small random biases (nonzero so the bias path is tested)."""
    params = []
    for fan_in, fan_out in zip(dims[:-1], dims[1:]):
        key, wk, bk = jax.random.split(key, 3)
        limit = jnp.sqrt(6.0 / (fan_in + fan_out))
        w = jax.random.uniform(wk, (fan_in, fan_out), jnp.float32, -limit, limit)
        b = 0.1 * jax.random.normal(bk, (fan_out,), jnp.float32)
        params.append((w, b))
    return params


def reference_forward(a_norm, in_feat, params):
    h = in_feat
    for w, b in params:
        h = _leaky_relu(a_norm @ (h @ w) + b)
    return h[1]


if __name__ == "__main__":
    key = jax.random.PRNGKey(0)
    k_graph, k_feat, k_param = jax.random.split(key, 3)

    N = 16                  # number of graph nodes
    h1, h2, h3 = 32, 64, 32

    a_norm = build_norm_adj(k_graph, N)                        # (16, 16)
    in_feat = jax.random.normal(k_feat, (N, 1), jnp.float32)   # (16, 1)
    params = init_params(k_param, [1, h1, h2, h3, 1])

    out = jax.block_until_ready(dummy_gcn2_forward(a_norm, in_feat, params))

    ref = reference_forward(a_norm, in_feat, params)
    assert out.shape == ref.shape == (1,)
    assert jnp.allclose(out, ref, atol=1e-5, rtol=1e-4), (out, ref)

    print("KERNEL_OK")
</pallas_src>

<mosaic_0001>
module attributes {stable_mosaic.version = 11 : i64} {
  func.func @gcn2_kernel(%arg0: memref<16x16xf32, #tpu.memory_space<vmem>>, %arg1: memref<4x64x128xf32, #tpu.memory_space<vmem>>, %arg2: memref<8x128xf32, #tpu.memory_space<vmem>>, %arg3: memref<1x128xf32, #tpu.memory_space<vmem>>) attributes {dimension_semantics = [], scalar_prefetch = 0 : i64, scratch_operands = 0 : i64, tpu.core_type = #tpu.core_type<tc>} {
    %c0 = arith.constant 0 : index
    %c0_0 = arith.constant 0 : index
    %0 = vector.load %arg0[%c0, %c0_0] : memref<16x16xf32, #tpu.memory_space<vmem>>, vector<16x16xf32>
    %c0_1 = arith.constant 0 : index
    %c0_2 = arith.constant 0 : index
    %1 = vector.load %arg2[%c0_1, %c0_2] : memref<8x128xf32, #tpu.memory_space<vmem>>, vector<8x128xf32>
    %2 = vector.extract_strided_slice %1 {offsets = [0, 0], sizes = [1, 128], strides = [1, 1]} : vector<8x128xf32> to vector<1x128xf32>
    %3 = vector.extract_strided_slice %1 {offsets = [1, 0], sizes = [1, 128], strides = [1, 1]} : vector<8x128xf32> to vector<1x128xf32>
    %4 = vector.extract_strided_slice %1 {offsets = [2, 0], sizes = [1, 128], strides = [1, 1]} : vector<8x128xf32> to vector<1x128xf32>
    %5 = vector.extract_strided_slice %1 {offsets = [3, 0], sizes = [1, 128], strides = [1, 1]} : vector<8x128xf32> to vector<1x128xf32>
    %6 = vector.extract_strided_slice %1 {offsets = [4, 0], sizes = [1, 16], strides = [1, 1]} : vector<8x128xf32> to vector<1x16xf32>
    %7 = vector.broadcast %6 : vector<1x16xf32> to vector<16x16xf32>
    %8 = arith.mulf %0, %7 : vector<16x16xf32>
    %cst = arith.constant dense<0.000000e+00> : vector<16xf32>
    %9 = vector.multi_reduction <add>, %8, %cst [1] : vector<16x16xf32> to vector<16xf32>
    %10 = vector.shape_cast %9 : vector<16xf32> to vector<16x1xf32>
    %c0_3 = arith.constant 0 : index
    %c0_4 = arith.constant 0 : index
    %c0_5 = arith.constant 0 : index
    %11 = vector.load %arg1[%c0_3, %c0_4, %c0_5] : memref<4x64x128xf32, #tpu.memory_space<vmem>>, vector<1x64x128xf32>
    %12 = vector.shape_cast %11 : vector<1x64x128xf32> to vector<64x128xf32>
    %13 = vector.extract_strided_slice %12 {offsets = [0, 0], sizes = [1, 128], strides = [1, 1]} : vector<64x128xf32> to vector<1x128xf32>
    %14 = vector.broadcast %10 : vector<16x1xf32> to vector<16x128xf32>
    %15 = vector.broadcast %13 : vector<1x128xf32> to vector<16x128xf32>
    %16 = arith.mulf %14, %15 : vector<16x128xf32>
    %17 = vector.broadcast %2 : vector<1x128xf32> to vector<16x128xf32>
    %18 = arith.addf %16, %17 : vector<16x128xf32>
    %cst_6 = arith.constant 0.000000e+00 : f32
    %19 = vector.broadcast %cst_6 : f32 to vector<16x128xf32>
    %20 = arith.cmpf ogt, %18, %19 : vector<16x128xf32>
    %cst_7 = arith.constant 0.00999999977 : f32
    %21 = vector.broadcast %cst_7 : f32 to vector<16x128xf32>
    %22 = arith.mulf %21, %18 : vector<16x128xf32>
    %23 = arith.select %20, %18, %22 : vector<16x128xi1>, vector<16x128xf32>
    %c1 = arith.constant 1 : index
    %c0_8 = arith.constant 0 : index
    %c0_9 = arith.constant 0 : index
    %24 = vector.load %arg1[%c1, %c0_8, %c0_9] : memref<4x64x128xf32, #tpu.memory_space<vmem>>, vector<1x64x128xf32>
    %25 = vector.shape_cast %24 : vector<1x64x128xf32> to vector<64x128xf32>
    %26 = vector.extract_strided_slice %23 {offsets = [0, 0], sizes = [16, 64], strides = [1, 1]} : vector<16x128xf32> to vector<16x64xf32>
    %cst_10 = arith.constant dense<0.000000e+00> : vector<16x128xf32>
    %27 = tpu.matmul %26, %25, %cst_10 {dimension_numbers = #tpu.dot_dimension_numbers<[1], [0], [0], [1], [0, 0, 1, 1], [], []>} : vector<16x64xf32>, vector<64x128xf32>, vector<16x128xf32> -> vector<16x128xf32>
    %cst_11 = arith.constant dense<0.000000e+00> : vector<16x128xf32>
    %28 = tpu.matmul %0, %27, %cst_11 {dimension_numbers = #tpu.dot_dimension_numbers<[1], [0], [0], [1], [0, 0, 1, 1], [], []>} : vector<16x16xf32>, vector<16x128xf32>, vector<16x128xf32> -> vector<16x128xf32>
    %29 = vector.broadcast %3 : vector<1x128xf32> to vector<16x128xf32>
    %30 = arith.addf %28, %29 : vector<16x128xf32>
    %cst_12 = arith.constant 0.000000e+00 : f32
    %31 = vector.broadcast %cst_12 : f32 to vector<16x128xf32>
    %32 = arith.cmpf ogt, %30, %31 : vector<16x128xf32>
    %cst_13 = arith.constant 0.00999999977 : f32
    %33 = vector.broadcast %cst_13 : f32 to vector<16x128xf32>
    %34 = arith.mulf %33, %30 : vector<16x128xf32>
    %35 = arith.select %32, %30, %34 : vector<16x128xi1>, vector<16x128xf32>
    %c2 = arith.constant 2 : index
    %c0_14 = arith.constant 0 : index
    %c0_15 = arith.constant 0 : index
    %36 = vector.load %arg1[%c2, %c0_14, %c0_15] : memref<4x64x128xf32, #tpu.memory_space<vmem>>, vector<1x64x128xf32>
    %37 = vector.shape_cast %36 : vector<1x64x128xf32> to vector<64x128xf32>
    %38 = vector.extract_strided_slice %35 {offsets = [0, 0], sizes = [16, 64], strides = [1, 1]} : vector<16x128xf32> to vector<16x64xf32>
    %cst_16 = arith.constant dense<0.000000e+00> : vector<16x128xf32>
    %39 = tpu.matmul %38, %37, %cst_16 {dimension_numbers = #tpu.dot_dimension_numbers<[1], [0], [0], [1], [0, 0, 1, 1], [], []>} : vector<16x64xf32>, vector<64x128xf32>, vector<16x128xf32> -> vector<16x128xf32>
    %cst_17 = arith.constant dense<0.000000e+00> : vector<16x128xf32>
    %40 = tpu.matmul %0, %39, %cst_17 {dimension_numbers = #tpu.dot_dimension_numbers<[1], [0], [0], [1], [0, 0, 1, 1], [], []>} : vector<16x16xf32>, vector<16x128xf32>, vector<16x128xf32> -> vector<16x128xf32>
    %41 = vector.broadcast %4 : vector<1x128xf32> to vector<16x128xf32>
    %42 = arith.addf %40, %41 : vector<16x128xf32>
    %cst_18 = arith.constant 0.000000e+00 : f32
    %43 = vector.broadcast %cst_18 : f32 to vector<16x128xf32>
    %44 = arith.cmpf ogt, %42, %43 : vector<16x128xf32>
    %cst_19 = arith.constant 0.00999999977 : f32
    %45 = vector.broadcast %cst_19 : f32 to vector<16x128xf32>
    %46 = arith.mulf %45, %42 : vector<16x128xf32>
    %47 = arith.select %44, %42, %46 : vector<16x128xi1>, vector<16x128xf32>
    %48 = vector.extract_strided_slice %47 {offsets = [0, 0], sizes = [16, 64], strides = [1, 1]} : vector<16x128xf32> to vector<16x64xf32>
    %c3 = arith.constant 3 : index
    %c0_20 = arith.constant 0 : index
    %c0_21 = arith.constant 0 : index
    %49 = vector.load %arg1[%c3, %c0_20, %c0_21] : memref<4x64x128xf32, #tpu.memory_space<vmem>>, vector<1x64x128xf32>
    %50 = vector.shape_cast %49 : vector<1x64x128xf32> to vector<64x128xf32>
    %cst_22 = arith.constant dense<0.000000e+00> : vector<16x128xf32>
    %51 = tpu.matmul %48, %50, %cst_22 {dimension_numbers = #tpu.dot_dimension_numbers<[1], [0], [0], [1], [0, 0, 1, 1], [], []>} : vector<16x64xf32>, vector<64x128xf32>, vector<16x128xf32> -> vector<16x128xf32>
    %52 = vector.extract_strided_slice %0 {offsets = [1, 0], sizes = [1, 16], strides = [1, 1]} : vector<16x16xf32> to vector<1x16xf32>
    %cst_23 = arith.constant dense<0.000000e+00> : vector<1x128xf32>
    %53 = tpu.matmul %52, %51, %cst_23 {dimension_numbers = #tpu.dot_dimension_numbers<[1], [0], [0], [1], [0, 0, 1, 1], [], []>} : vector<1x16xf32>, vector<16x128xf32>, vector<1x128xf32> -> vector<1x128xf32>
    %54 = arith.addf %53, %5 : vector<1x128xf32>
    %cst_24 = arith.constant 0.000000e+00 : f32
    %55 = vector.broadcast %cst_24 : f32 to vector<1x128xf32>
    %56 = arith.cmpf ogt, %54, %55 : vector<1x128xf32>
    %cst_25 = arith.constant 0.00999999977 : f32
    %57 = vector.broadcast %cst_25 : f32 to vector<1x128xf32>
    %58 = arith.mulf %57, %54 : vector<1x128xf32>
    %59 = arith.select %56, %54, %58 : vector<1x128xi1>, vector<1x128xf32>
    %c0_26 = arith.constant 0 : index
    %c0_27 = arith.constant 0 : index
    %60 = vector.load %arg3[%c0_26, %c0_27] : memref<1x128xf32, #tpu.memory_space<vmem>>, vector<1x128xf32>
    tpu.vector_store %arg3[%c0_26, %c0_27], %59 {strides = array<i32>} : memref<1x128xf32, #tpu.memory_space<vmem>>, vector<1x128xf32>,
    return
  }
}

</mosaic_0001>

<llo_original>
// kernel: tpu_custom_call.1
$region0: #{tpu_custom_call.1}
  #allocation0 [shape = 'u32[]', space=smem, size = 0x4, offset = 0x4, fixed_abs, tag = 'smem constant byte address 0x4 - core index']
  #allocation1 [shape = 'u32[144,128]{1,0:T(1,128)}', space=vmem, size = 0x12000, scoped, tag = 'internal scratch']
  %s0 = inlined_call_operand.hbm [shape: f32[16,16], index: 0, kind: input, shape index: {}]
  %s1 = inlined_call_operand.hbm [shape: f32[4,64,128], index: 1, kind: input, shape index: {}]
  %s2 = inlined_call_operand.hbm [shape: f32[8,128], index: 2, kind: input, shape index: {}]
  %s3 = inlined_call_operand.hbm [shape: f32[1,128], index: 3, kind: output, shape index: {}]
  %s4 = sld [smem:[#allocation0]]
  $region34: #{tpu_custom_call.1} parent=0
    _
  %s6 = ssub.s32 1, %s4
  %s7 = scalar_select 0, %s6, %s4
  $region1: #{tpu_custom_call.1} parent=0
    #allocation2 [shape = 'u8[8192]{0}', space=vmem, size = 0x2000, scoped, tag = 'input window, operand 0, single buffered']
    #allocation3 [shape = 's32[1]{0}', space=sflag, size = 0x4, scoped, tag = 'scoped memory for tpu_custom_call.1']
    #allocation4 [shape = 's32[1]{0}', space=sflag, size = 0x4, scoped, tag = 'scoped memory for tpu_custom_call.1']
    #allocation5 [shape = 'u8[131072]{0}', space=vmem, size = 0x20000, scoped, tag = 'input window, operand 1, single buffered']
    #allocation6 [shape = 's32[1]{0}', space=sflag, size = 0x4, scoped, tag = 'scoped memory for tpu_custom_call.1']
    #allocation7 [shape = 'u8[4096]{0}', space=vmem, size = 0x1000, scoped, tag = 'input window, operand 2, single buffered']
    #allocation8 [shape = 'u8[512]{0}', space=vmem, size = 0x400, scoped, tag = 'output window, operand 0, single buffered']
    %8 = vsyncpa [#allocation3], 0
    %9 = vsyncpa [#allocation6], 0
    %10 = vsyncpa [#allocation4], 0
    // Predicated region
    $region2: #{tpu_custom_call.1} parent=1 // pred_check
      _
    $region3: #{tpu_custom_call.1} parent=1 // pred_check_branch
      %12 = sbr.rel (0) target = $region5
    $region4: #{tpu_custom_call.1} parent=1 // pred_region
      %s14 = ssub.s32 256, 256
      %15 = vsyncadd [#allocation3], %s14
      %s16 = sshll.u32 [#allocation2], 4
      %s17 = int_to_ptr.vmem [resolvable:$true] %s16
      %22 = dma.hbm_to_vmem [thread:$0]  %s0, 256, %s17, [#allocation3], 128, 128, 8
    $region5: #{tpu_custom_call.1} parent=1 // pred_fallthru
      _
    // Predicated region
    $region6: #{tpu_custom_call.1} parent=1 // pred_check
      _
    $region7: #{tpu_custom_call.1} parent=1 // pred_check_branch
      %24 = sbr.rel (0) target = $region9
    $region8: #{tpu_custom_call.1} parent=1 // pred_region
      %s26 = ssub.s32 4096, 4096
      %27 = vsyncadd [#allocation6], %s26
      %s28 = sshll.u32 [#allocation5], 4
      %s29 = int_to_ptr.vmem [resolvable:$true] %s28
      %34 = dma.hbm_to_vmem [thread:$0]  %s1, 4096, %s29, [#allocation6], 128, 128, 8
    $region9: #{tpu_custom_call.1} parent=1 // pred_fallthru
      _
    // Predicated region
    $region10: #{tpu_custom_call.1} parent=1 // pred_check
      _
    $region11: #{tpu_custom_call.1} parent=1 // pred_check_branch
      %36 = sbr.rel (0) target = $region13
    $region12: #{tpu_custom_call.1} parent=1 // pred_region
      %s38 = ssub.s32 128, 128
      %39 = vsyncadd [#allocation6], %s38
      %s41 = sshll.u32 [#allocation7], 4
      %s42 = int_to_ptr.vmem [resolvable:$true] %s41
      %44 = dma.hbm_to_vmem [thread:$0]  %s2, 128, %s42, [#allocation6]
    $region13: #{tpu_custom_call.1} parent=1 // pred_fallthru
      _
    // Predicated region
    $region14: #{tpu_custom_call.1} parent=1 // pred_check
      _
    $region15: #{tpu_custom_call.1} parent=1 // pred_check_branch
      %46 = sbr.rel (0) target = $region17
    $region16: #{tpu_custom_call.1} parent=1 // pred_region
      %47 = dma.done [#allocation3], 256
    $region17: #{tpu_custom_call.1} parent=1 // pred_fallthru
      _
    // Predicated region
    $region18: #{tpu_custom_call.1} parent=1 // pred_check
      _
    $region19: #{tpu_custom_call.1} parent=1 // pred_check_branch
      %49 = sbr.rel (0) target = $region21
    $region20: #{tpu_custom_call.1} parent=1 // pred_region
      %50 = dma.done [#allocation6], 4096
    $region21: #{tpu_custom_call.1} parent=1 // pred_fallthru
      _
    // Predicated region
    $region22: #{tpu_custom_call.1} parent=1 // pred_check
      _
    $region23: #{tpu_custom_call.1} parent=1 // pred_check_branch
      %52 = sbr.rel (0) target = $region25
    $region24: #{tpu_custom_call.1} parent=1 // pred_region
      %53 = dma.done [#allocation6], 128
    $region25: #{tpu_custom_call.1} parent=1 // pred_fallthru
      _
    %v54 = vld [vmem:[#allocation2] sm:$0xff]
    %v55 = vld [vmem:[#allocation2 + $0x8] sm:$0xff]
    %v56 = vld [vmem:[#allocation7] sm:$0xff]
    %v57 = vlaneseq
    %v58 = vshrl.u32 %v57, 7
    %v59 = vsub.s32 4, %v58
    %v60 = vrot.slane %v56, %v59
    %v61 = vmul.f32 %v54, %v60
    %v62 = vmul.f32 %v55, %v60
    %vm63 = vcmask 130048
    %v64 = vsel %vm63, %v61, 0.0
    %65 = vadd.xlane.f32.xlu0 %v64
    %v66 = vpop.xlane.xlu0 %65
    %v67 = vsel %vm63, %v62, 0.0
    %68 = vadd.xlane.f32.xlu0 %v67
    %v69 = vpop.xlane.xlu0 %68
    %v70 = vld [vmem:[#allocation5] sm:$0xff]
    %v71 = vlaneseq
    %v72 = vshrl.u32 %v71, 7
    %v73 = vsub.s32 0, %v72
    %v74 = vrot.slane %v70, %v73
    %v75 = vmul.f32 %v66, %v74
    %v76 = vmul.f32 %v69, %v74
    %v77 = vlaneseq
    %v78 = vshrl.u32 %v77, 7
    %v79 = vsub.s32 0, %v78
    %v80 = vrot.slane %v56, %v79
    %v81 = vadd.f32 %v75, %v80
    %v82 = vadd.f32 %v76, %v80
    %vm83 = vcmp.gt.f32.partialorder %v81, 0.0
    %vm84 = vcmp.gt.f32.partialorder %v82, 0.0
    %v85 = vmul.f32 %v81, 0.01
    %v86 = vmul.f32 %v82, 0.01
    %v87 = vsel %vm83, %v81, %v85
    %v88 = vsel %vm84, %v82, %v86
    %s89 = scalar_lea.vmem [#allocation5], 64
    %v90 = vld [vmem:[%s89] sm:$0xff]
    %v91 = vld [vmem:[%s89 + $0x8] sm:$0xff]
    %v92 = vld [vmem:[%s89 + $0x10] sm:$0xff]
    %v93 = vld [vmem:[%s89 + $0x18] sm:$0xff]
    %v94 = vld [vmem:[%s89 + $0x20] sm:$0xff]
    %v95 = vld [vmem:[%s89 + $0x28] sm:$0xff]
    %v96 = vld [vmem:[%s89 + $0x30] sm:$0xff]
    %v97 = vld [vmem:[%s89 + $0x38] sm:$0xff]
    %vm98 = vcmask 523264
    %v100 = vsel %vm98, %v87, 0
    %v103 = vsel %vm98, %v88, 0
    %105 = vmatprep.subr.mxu0 0.0
    %106 = vmatpush1.msra.mxu0 0.0
    %107 = vmatprep.subr.mxu0 0.0
    %108 = vmatpush1.msra.mxu0 0.0
    %109 = vmatprep.subr.mxu0 0.0
    %110 = vmatpush1.msra.mxu0 0.0
    %111 = vmatprep.subr.mxu0 0.0
    %112 = vmatpush1.msra.mxu0 0.0
    %113 = vmatprep.subr.mxu0 0.0
    %114 = vmatpush1.msra.mxu0 0.0
    %115 = vmatprep.subr.mxu0 0.0
    %116 = vmatpush1.msra.mxu0 0.0
    %117 = vmatprep.subr.mxu0 0.0
    %118 = vmatpush1.msra.mxu0 0.0
    %119 = vmatprep.subr.mxu0 0.0
    %120 = vmatpush1.msra.mxu0 0.0
    %121 = vmatprep.subr.mxu0 0.0
    %122 = vmatpush1.msra.mxu0 %v97
    %123 = vmatprep.subr.mxu0 0.0
    %124 = vmatpush1.msra.mxu0 %v96
    %125 = vmatprep.subr.mxu0 0.0
    %126 = vmatpush1.msra.mxu0 %v95
    %127 = vmatprep.subr.mxu0 0.0
    %128 = vmatpush1.msra.mxu0 %v94
    %129 = vmatprep.subr.mxu0 0.0
    %130 = vmatpush1.msra.mxu0 %v93
    %131 = vmatprep.subr.mxu0 0.0
    %132 = vmatpush1.msra.mxu0 %v92
    %133 = vmatprep.subr.mxu0 0.0
    %134 = vmatpush1.msra.mxu0 %v91
    %135 = vmatprep.subr.mxu0 0.0
    %136 = vmatpush1.msra.mxu0 %v90
    %137 = vmatprep.subr.mxu0 0.0
    %138 = vmatpush2.msra.mxu0 0.0
    %139 = vmatprep.subr.mxu0 0.0
    %140 = vmatpush2.msra.mxu0 0.0
    %141 = vmatprep.subr.mxu0 0.0
    %142 = vmatpush2.msra.mxu0 0.0
    %143 = vmatprep.subr.mxu0 0.0
    %144 = vmatpush2.msra.mxu0 0.0
    %145 = vmatprep.subr.mxu0 0.0
    %146 = vmatpush2.msra.mxu0 0.0
    %147 = vmatprep.subr.mxu0 0.0
    %148 = vmatpush2.msra.mxu0 0.0
    %149 = vmatprep.subr.mxu0 0.0
    %150 = vmatpush2.msra.mxu0 0.0
    %151 = vmatprep.subr.mxu0 0.0
    %152 = vmatpush2.msra.mxu0 0.0
    %153 = vmatprep.subr.mxu0 0.0
    %154 = vmatpush2.msra.mxu0 0.0
    %155 = vmatprep.subr.mxu0 0.0
    %156 = vmatpush2.msra.mxu0 0.0
    %157 = vmatprep.subr.mxu0 0.0
    %158 = vmatpush2.msra.mxu0 0.0
    %159 = vmatprep.subr.mxu0 0.0
    %160 = vmatpush2.msra.mxu0 0.0
    %161 = vmatprep.subr.mxu0 0.0
    %162 = vmatpush2.msra.mxu0 0.0
    %163 = vmatprep.subr.mxu0 0.0
    %164 = vmatpush2.msra.mxu0 0.0
    %165 = vmatprep.subr.mxu0 0.0
    %166 = vmatpush2.msra.mxu0 0.0
    %167 = vmatprep.subr.mxu0 0.0
    %168 = vmatpush2.msra.mxu0 0.0
    %169 = vmatprep.mubr.f32.mxu0 0.0
    %170 = vmatmul.mubr.f32.gmra.mxu0 %v100
    %v171 = vpop.f32.mrf.mxu0
    %v172 = vadd.f32 0.0, %v171
    %v173 = vpop.f32.mrf.mxu0
    %174 = vmatprep.mubr.f32.mxu0 0.0
    %175 = vmatmul.mubr.f32.gmra.mxu0 %v103
    %v176 = vpop.f32.mrf.mxu0
    %v177 = vadd.f32 0.0, %v176
    %v178 = vpop.f32.mrf.mxu0
    %179 = vdwg.mxu0
    %v180 = vlaneseq
    %v181 = vshrl.u32 %v180, 7
    %v182 = vsub.s32 1, %v181
    %v183 = vrot.slane %v56, %v182
    %v185 = vsel %vm63, %v54, 0
    %v188 = vsel %vm63, %v55, 0
    %190 = vmatprep.subr.mxu0 0.0
    %191 = vmatpush1.msra.mxu0 0.0
    %192 = vmatprep.subr.mxu0 0.0
    %193 = vmatpush1.msra.mxu0 0.0
    %194 = vmatprep.subr.mxu0 0.0
    %195 = vmatpush1.msra.mxu0 0.0
    %196 = vmatprep.subr.mxu0 0.0
    %197 = vmatpush1.msra.mxu0 0.0
    %198 = vmatprep.subr.mxu0 0.0
    %199 = vmatpush1.msra.mxu0 0.0
    %200 = vmatprep.subr.mxu0 0.0
    %201 = vmatpush1.msra.mxu0 0.0
    %202 = vmatprep.subr.mxu0 0.0
    %203 = vmatpush1.msra.mxu0 0.0
    %204 = vmatprep.subr.mxu0 0.0
    %205 = vmatpush1.msra.mxu0 0.0
    %206 = vmatprep.subr.mxu0 0.0
    %207 = vmatpush1.msra.mxu0 0.0
    %208 = vmatprep.subr.mxu0 0.0
    %209 = vmatpush1.msra.mxu0 0.0
    %210 = vmatprep.subr.mxu0 0.0
    %211 = vmatpush1.msra.mxu0 0.0
    %212 = vmatprep.subr.mxu0 0.0
    %213 = vmatpush1.msra.mxu0 0.0
    %214 = vmatprep.subr.mxu0 0.0
    %215 = vmatpush1.msra.mxu0 0.0
    %216 = vmatprep.subr.mxu0 0.0
    %217 = vmatpush1.msra.mxu0 0.0
    %218 = vmatprep.subr.mxu0 0.0
    %219 = vmatpush1.msra.mxu0 %v177
    %220 = vmatprep.subr.mxu0 0.0
    %221 = vmatpush1.msra.mxu0 %v172
    %222 = vmatprep.subr.mxu0 0.0
    %223 = vmatpush2.msra.mxu0 0.0
    %224 = vmatprep.subr.mxu0 0.0
    %225 = vmatpush2.msra.mxu0 0.0
    %226 = vmatprep.subr.mxu0 0.0
    %227 = vmatpush2.msra.mxu0 0.0
    %228 = vmatprep.subr.mxu0 0.0
    %229 = vmatpush2.msra.mxu0 0.0
    %230 = vmatprep.subr.mxu0 0.0
    %231 = vmatpush2.msra.mxu0 0.0
    %232 = vmatprep.subr.mxu0 0.0
    %233 = vmatpush2.msra.mxu0 0.0
    %234 = vmatprep.subr.mxu0 0.0
    %235 = vmatpush2.msra.mxu0 0.0
    %236 = vmatprep.subr.mxu0 0.0
    %237 = vmatpush2.msra.mxu0 0.0
    %238 = vmatprep.subr.mxu0 0.0
    %239 = vmatpush2.msra.mxu0 0.0
    %240 = vmatprep.subr.mxu0 0.0
    %241 = vmatpush2.msra.mxu0 0.0
    %242 = vmatprep.subr.mxu0 0.0
    %243 = vmatpush2.msra.mxu0 0.0
    %244 = vmatprep.subr.mxu0 0.0
    %245 = vmatpush2.msra.mxu0 0.0
    %246 = vmatprep.subr.mxu0 0.0
    %247 = vmatpush2.msra.mxu0 0.0
    %248 = vmatprep.subr.mxu0 0.0
    %249 = vmatpush2.msra.mxu0 0.0
    %250 = vmatprep.subr.mxu0 0.0
    %251 = vmatpush2.msra.mxu0 0.0
    %252 = vmatprep.subr.mxu0 0.0
    %253 = vmatpush2.msra.mxu0 0.0
    %254 = vmatprep.mubr.f32.mxu0 0.0
    %255 = vmatmul.mubr.f32.gmra.mxu0 %v185
    %v256 = vpop.f32.mrf.mxu0
    %v257 = vadd.f32 %v183, %v256
    %v258 = vpop.f32.mrf.mxu0
    %259 = vmatprep.mubr.f32.mxu0 0.0
    %260 = vmatmul.mubr.f32.gmra.mxu0 %v188
    %v261 = vpop.f32.mrf.mxu0
    %v262 = vadd.f32 %v183, %v261
    %v263 = vpop.f32.mrf.mxu0
    %264 = vdwg.mxu0
    %vm265 = vcmp.gt.f32.partialorder %v257, 0.0
    %vm266 = vcmp.gt.f32.partialorder %v262, 0.0
    %v267 = vmul.f32 %v257, 0.01
    %v268 = vmul.f32 %v262, 0.01
    %v269 = vsel %vm265, %v257, %v267
    %v270 = vsel %vm266, %v262, %v268
    %s271 = scalar_lea.vmem [#allocation5], 128
    %v272 = vld [vmem:[%s271] sm:$0xff]
    %v273 = vld [vmem:[%s271 + $0x8] sm:$0xff]
    %v274 = vld [vmem:[%s271 + $0x10] sm:$0xff]
    %v275 = vld [vmem:[%s271 + $0x18] sm:$0xff]
    %v276 = vld [vmem:[%s271 + $0x20] sm:$0xff]
    %v277 = vld [vmem:[%s271 + $0x28] sm:$0xff]
    %v278 = vld [vmem:[%s271 + $0x30] sm:$0xff]
    %v279 = vld [vmem:[%s271 + $0x38] sm:$0xff]
    %v281 = vsel %vm98, %v269, 0
    %v284 = vsel %vm98, %v270, 0
    %286 = vmatprep.subr.mxu0 0.0
    %287 = vmatpush1.msra.mxu0 0.0
    %288 = vmatprep.subr.mxu0 0.0
    %289 = vmatpush1.msra.mxu0 0.0
    %290 = vmatprep.subr.mxu0 0.0
    %291 = vmatpush1.msra.mxu0 0.0
    %292 = vmatprep.subr.mxu0 0.0
    %293 = vmatpush1.msra.mxu0 0.0
    %294 = vmatprep.subr.mxu0 0.0
    %295 = vmatpush1.msra.mxu0 0.0
    %296 = vmatprep.subr.mxu0 0.0
    %297 = vmatpush1.msra.mxu0 0.0
    %298 = vmatprep.subr.mxu0 0.0
    %299 = vmatpush1.msra.mxu0 0.0
    %300 = vmatprep.subr.mxu0 0.0
    %301 = vmatpush1.msra.mxu0 0.0
    %302 = vmatprep.subr.mxu0 0.0
    %303 = vmatpush1.msra.mxu0 %v279
    %304 = vmatprep.subr.mxu0 0.0
    %305 = vmatpush1.msra.mxu0 %v278
    %306 = vmatprep.subr.mxu0 0.0
    %307 = vmatpush1.msra.mxu0 %v277
    %308 = vmatprep.subr.mxu0 0.0
    %309 = vmatpush1.msra.mxu0 %v276
    %310 = vmatprep.subr.mxu0 0.0
    %311 = vmatpush1.msra.mxu0 %v275
    %312 = vmatprep.subr.mxu0 0.0
    %313 = vmatpush1.msra.mxu0 %v274
    %314 = vmatprep.subr.mxu0 0.0
    %315 = vmatpush1.msra.mxu0 %v273
    %316 = vmatprep.subr.mxu0 0.0
    %317 = vmatpush1.msra.mxu0 %v272
    %318 = vmatprep.subr.mxu0 0.0
    %319 = vmatpush2.msra.mxu0 0.0
    %320 = vmatprep.subr.mxu0 0.0
    %321 = vmatpush2.msra.mxu0 0.0
    %322 = vmatprep.subr.mxu0 0.0
    %323 = vmatpush2.msra.mxu0 0.0
    %324 = vmatprep.subr.mxu0 0.0
    %325 = vmatpush2.msra.mxu0 0.0
    %326 = vmatprep.subr.mxu0 0.0
    %327 = vmatpush2.msra.mxu0 0.0
    %328 = vmatprep.subr.mxu0 0.0
    %329 = vmatpush2.msra.mxu0 0.0
    %330 = vmatprep.subr.mxu0 0.0
    %331 = vmatpush2.msra.mxu0 0.0
    %332 = vmatprep.subr.mxu0 0.0
    %333 = vmatpush2.msra.mxu0 0.0
    %334 = vmatprep.subr.mxu0 0.0
    %335 = vmatpush2.msra.mxu0 0.0
    %336 = vmatprep.subr.mxu0 0.0
    %337 = vmatpush2.msra.mxu0 0.0
    %338 = vmatprep.subr.mxu0 0.0
    %339 = vmatpush2.msra.mxu0 0.0
    %340 = vmatprep.subr.mxu0 0.0
    %341 = vmatpush2.msra.mxu0 0.0
    %342 = vmatprep.subr.mxu0 0.0
    %343 = vmatpush2.msra.mxu0 0.0
    %344 = vmatprep.subr.mxu0 0.0
    %345 = vmatpush2.msra.mxu0 0.0
    %346 = vmatprep.subr.mxu0 0.0
    %347 = vmatpush2.msra.mxu0 0.0
    %348 = vmatprep.subr.mxu0 0.0
    %349 = vmatpush2.msra.mxu0 0.0
    %350 = vmatprep.mubr.f32.mxu0 0.0
    %351 = vmatmul.mubr.f32.gmra.mxu0 %v281
    %v352 = vpop.f32.mrf.mxu0
    %v353 = vadd.f32 0.0, %v352
    %v354 = vpop.f32.mrf.mxu0
    %355 = vmatprep.mubr.f32.mxu0 0.0
    %356 = vmatmul.mubr.f32.gmra.mxu0 %v284
    %v357 = vpop.f32.mrf.mxu0
    %v358 = vadd.f32 0.0, %v357
    %v359 = vpop.f32.mrf.mxu0
    %360 = vdwg.mxu0
    %v361 = vlaneseq
    %v362 = vshrl.u32 %v361, 7
    %v363 = vsub.s32 2, %v362
    %v364 = vrot.slane %v56, %v363
    %365 = vmatprep.subr.mxu0 0.0
    %366 = vmatpush1.msra.mxu0 0.0
    %367 = vmatprep.subr.mxu0 0.0
    %368 = vmatpush1.msra.mxu0 0.0
    %369 = vmatprep.subr.mxu0 0.0
    %370 = vmatpush1.msra.mxu0 0.0
    %371 = vmatprep.subr.mxu0 0.0
    %372 = vmatpush1.msra.mxu0 0.0
    %373 = vmatprep.subr.mxu0 0.0
    %374 = vmatpush1.msra.mxu0 0.0
    %375 = vmatprep.subr.mxu0 0.0
    %376 = vmatpush1.msra.mxu0 0.0
    %377 = vmatprep.subr.mxu0 0.0
    %378 = vmatpush1.msra.mxu0 0.0
    %379 = vmatprep.subr.mxu0 0.0
    %380 = vmatpush1.msra.mxu0 0.0
    %381 = vmatprep.subr.mxu0 0.0
    %382 = vmatpush1.msra.mxu0 0.0
    %383 = vmatprep.subr.mxu0 0.0
    %384 = vmatpush1.msra.mxu0 0.0
    %385 = vmatprep.subr.mxu0 0.0
    %386 = vmatpush1.msra.mxu0 0.0
    %387 = vmatprep.subr.mxu0 0.0
    %388 = vmatpush1.msra.mxu0 0.0
    %389 = vmatprep.subr.mxu0 0.0
    %390 = vmatpush1.msra.mxu0 0.0
    %391 = vmatprep.subr.mxu0 0.0
    %392 = vmatpush1.msra.mxu0 0.0
    %393 = vmatprep.subr.mxu0 0.0
    %394 = vmatpush1.msra.mxu0 %v358
    %395 = vmatprep.subr.mxu0 0.0
    %396 = vmatpush1.msra.mxu0 %v353
    %397 = vmatprep.subr.mxu0 0.0
    %398 = vmatpush2.msra.mxu0 0.0
    %399 = vmatprep.subr.mxu0 0.0
    %400 = vmatpush2.msra.mxu0 0.0
    %401 = vmatprep.subr.mxu0 0.0
    %402 = vmatpush2.msra.mxu0 0.0
    %403 = vmatprep.subr.mxu0 0.0
    %404 = vmatpush2.msra.mxu0 0.0
    %405 = vmatprep.subr.mxu0 0.0
    %406 = vmatpush2.msra.mxu0 0.0
    %407 = vmatprep.subr.mxu0 0.0
    %408 = vmatpush2.msra.mxu0 0.0
    %409 = vmatprep.subr.mxu0 0.0
    %410 = vmatpush2.msra.mxu0 0.0
    %411 = vmatprep.subr.mxu0 0.0
    %412 = vmatpush2.msra.mxu0 0.0
    %413 = vmatprep.subr.mxu0 0.0
    %414 = vmatpush2.msra.mxu0 0.0
    %415 = vmatprep.subr.mxu0 0.0
    %416 = vmatpush2.msra.mxu0 0.0
    %417 = vmatprep.subr.mxu0 0.0
    %418 = vmatpush2.msra.mxu0 0.0
    %419 = vmatprep.subr.mxu0 0.0
    %420 = vmatpush2.msra.mxu0 0.0
    %421 = vmatprep.subr.mxu0 0.0
    %422 = vmatpush2.msra.mxu0 0.0
    %423 = vmatprep.subr.mxu0 0.0
    %424 = vmatpush2.msra.mxu0 0.0
    %425 = vmatprep.subr.mxu0 0.0
    %426 = vmatpush2.msra.mxu0 0.0
    %427 = vmatprep.subr.mxu0 0.0
    %428 = vmatpush2.msra.mxu0 0.0
    %429 = vmatprep.mubr.f32.mxu0 0.0
    %430 = vmatmul.mubr.f32.gmra.mxu0 %v185
    %v431 = vpop.f32.mrf.mxu0
    %v432 = vadd.f32 %v364, %v431
    %v433 = vpop.f32.mrf.mxu0
    %434 = vmatprep.mubr.f32.mxu0 0.0
    %435 = vmatmul.mubr.f32.gmra.mxu0 %v188
    %v436 = vpop.f32.mrf.mxu0
    %v437 = vadd.f32 %v364, %v436
    %v438 = vpop.f32.mrf.mxu0
    %439 = vdwg.mxu0
    %vm440 = vcmp.gt.f32.partialorder %v432, 0.0
    %vm441 = vcmp.gt.f32.partialorder %v437, 0.0
    %v442 = vmul.f32 %v432, 0.01
    %v443 = vmul.f32 %v437, 0.01
    %v444 = vsel %vm440, %v432, %v442
    %v445 = vsel %vm441, %v437, %v443
    %s446 = scalar_lea.vmem [#allocation5], 192
    %v447 = vld [vmem:[%s446] sm:$0xff]
    %v448 = vld [vmem:[%s446 + $0x8] sm:$0xff]
    %v449 = vld [vmem:[%s446 + $0x10] sm:$0xff]
    %v450 = vld [vmem:[%s446 + $0x18] sm:$0xff]
    %v451 = vld [vmem:[%s446 + $0x20] sm:$0xff]
    %v452 = vld [vmem:[%s446 + $0x28] sm:$0xff]
    %v453 = vld [vmem:[%s446 + $0x30] sm:$0xff]
    %v454 = vld [vmem:[%s446 + $0x38] sm:$0xff]
    %v456 = vsel %vm98, %v444, 0
    %v459 = vsel %vm98, %v445, 0
    %461 = vmatprep.subr.mxu0 0.0
    %462 = vmatpush1.msra.mxu0 0.0
    %463 = vmatprep.subr.mxu0 0.0
    %464 = vmatpush1.msra.mxu0 0.0
    %465 = vmatprep.subr.mxu0 0.0
    %466 = vmatpush1.msra.mxu0 0.0
    %467 = vmatprep.subr.mxu0 0.0
    %468 = vmatpush1.msra.mxu0 0.0
    %469 = vmatprep.subr.mxu0 0.0
    %470 = vmatpush1.msra.mxu0 0.0
    %471 = vmatprep.subr.mxu0 0.0
    %472 = vmatpush1.msra.mxu0 0.0
    %473 = vmatprep.subr.mxu0 0.0
    %474 = vmatpush1.msra.mxu0 0.0
    %475 = vmatprep.subr.mxu0 0.0
    %476 = vmatpush1.msra.mxu0 0.0
    %477 = vmatprep.subr.mxu0 0.0
    %478 = vmatpush1.msra.mxu0 %v454
    %479 = vmatprep.subr.mxu0 0.0
    %480 = vmatpush1.msra.mxu0 %v453
    %481 = vmatprep.subr.mxu0 0.0
    %482 = vmatpush1.msra.mxu0 %v452
    %483 = vmatprep.subr.mxu0 0.0
    %484 = vmatpush1.msra.mxu0 %v451
    %485 = vmatprep.subr.mxu0 0.0
    %486 = vmatpush1.msra.mxu0 %v450
    %487 = vmatprep.subr.mxu0 0.0
    %488 = vmatpush1.msra.mxu0 %v449
    %489 = vmatprep.subr.mxu0 0.0
    %490 = vmatpush1.msra.mxu0 %v448
    %491 = vmatprep.subr.mxu0 0.0
    %492 = vmatpush1.msra.mxu0 %v447
    %493 = vmatprep.subr.mxu0 0.0
    %494 = vmatpush2.msra.mxu0 0.0
    %495 = vmatprep.subr.mxu0 0.0
    %496 = vmatpush2.msra.mxu0 0.0
    %497 = vmatprep.subr.mxu0 0.0
    %498 = vmatpush2.msra.mxu0 0.0
    %499 = vmatprep.subr.mxu0 0.0
    %500 = vmatpush2.msra.mxu0 0.0
    %501 = vmatprep.subr.mxu0 0.0
    %502 = vmatpush2.msra.mxu0 0.0
    %503 = vmatprep.subr.mxu0 0.0
    %504 = vmatpush2.msra.mxu0 0.0
    %505 = vmatprep.subr.mxu0 0.0
    %506 = vmatpush2.msra.mxu0 0.0
    %507 = vmatprep.subr.mxu0 0.0
    %508 = vmatpush2.msra.mxu0 0.0
    %509 = vmatprep.subr.mxu0 0.0
    %510 = vmatpush2.msra.mxu0 0.0
    %511 = vmatprep.subr.mxu0 0.0
    %512 = vmatpush2.msra.mxu0 0.0
    %513 = vmatprep.subr.mxu0 0.0
    %514 = vmatpush2.msra.mxu0 0.0
    %515 = vmatprep.subr.mxu0 0.0
    %516 = vmatpush2.msra.mxu0 0.0
    %517 = vmatprep.subr.mxu0 0.0
    %518 = vmatpush2.msra.mxu0 0.0
    %519 = vmatprep.subr.mxu0 0.0
    %520 = vmatpush2.msra.mxu0 0.0
    %521 = vmatprep.subr.mxu0 0.0
    %522 = vmatpush2.msra.mxu0 0.0
    %523 = vmatprep.subr.mxu0 0.0
    %524 = vmatpush2.msra.mxu0 0.0
    %525 = vmatprep.mubr.f32.mxu0 0.0
    %526 = vmatmul.mubr.f32.gmra.mxu0 %v456
    %v527 = vpop.f32.mrf.mxu0
    %v528 = vadd.f32 0.0, %v527
    %v529 = vpop.f32.mrf.mxu0
    %530 = vmatprep.mubr.f32.mxu0 0.0
    %531 = vmatmul.mubr.f32.gmra.mxu0 %v459
    %v532 = vpop.f32.mrf.mxu0
    %v533 = vadd.f32 0.0, %v532
    %v534 = vpop.f32.mrf.mxu0
    %535 = vdwg.mxu0
    %v536 = vrot.slane %v54, 1
    %v538 = vrot.slane %v56, 3
    %v540 = vsel %vm63, %v536, 0
    %542 = vmatprep.subr.mxu0 0.0
    %543 = vmatpush1.msra.mxu0 0.0
    %544 = vmatprep.subr.mxu0 0.0
    %545 = vmatpush1.msra.mxu0 0.0
    %546 = vmatprep.subr.mxu0 0.0
    %547 = vmatpush1.msra.mxu0 0.0
    %548 = vmatprep.subr.mxu0 0.0
    %549 = vmatpush1.msra.mxu0 0.0
    %550 = vmatprep.subr.mxu0 0.0
    %551 = vmatpush1.msra.mxu0 0.0
    %552 = vmatprep.subr.mxu0 0.0
    %553 = vmatpush1.msra.mxu0 0.0
    %554 = vmatprep.subr.mxu0 0.0
    %555 = vmatpush1.msra.mxu0 0.0
    %556 = vmatprep.subr.mxu0 0.0
    %557 = vmatpush1.msra.mxu0 0.0
    %558 = vmatprep.subr.mxu0 0.0
    %559 = vmatpush1.msra.mxu0 0.0
    %560 = vmatprep.subr.mxu0 0.0
    %561 = vmatpush1.msra.mxu0 0.0
    %562 = vmatprep.subr.mxu0 0.0
    %563 = vmatpush1.msra.mxu0 0.0
    %564 = vmatprep.subr.mxu0 0.0
    %565 = vmatpush1.msra.mxu0 0.0
    %566 = vmatprep.subr.mxu0 0.0
    %567 = vmatpush1.msra.mxu0 0.0
    %568 = vmatprep.subr.mxu0 0.0
    %569 = vmatpush1.msra.mxu0 0.0
    %570 = vmatprep.subr.mxu0 0.0
    %571 = vmatpush1.msra.mxu0 %v533
    %572 = vmatprep.subr.mxu0 0.0
    %573 = vmatpush1.msra.mxu0 %v528
    %574 = vmatprep.subr.mxu0 0.0
    %575 = vmatpush2.msra.mxu0 0.0
    %576 = vmatprep.subr.mxu0 0.0
    %577 = vmatpush2.msra.mxu0 0.0
    %578 = vmatprep.subr.mxu0 0.0
    %579 = vmatpush2.msra.mxu0 0.0
    %580 = vmatprep.subr.mxu0 0.0
    %581 = vmatpush2.msra.mxu0 0.0
    %582 = vmatprep.subr.mxu0 0.0
    %583 = vmatpush2.msra.mxu0 0.0
    %584 = vmatprep.subr.mxu0 0.0
    %585 = vmatpush2.msra.mxu0 0.0
    %586 = vmatprep.subr.mxu0 0.0
    %587 = vmatpush2.msra.mxu0 0.0
    %588 = vmatprep.subr.mxu0 0.0
    %589 = vmatpush2.msra.mxu0 0.0
    %590 = vmatprep.subr.mxu0 0.0
    %591 = vmatpush2.msra.mxu0 0.0
    %592 = vmatprep.subr.mxu0 0.0
    %593 = vmatpush2.msra.mxu0 0.0
    %594 = vmatprep.subr.mxu0 0.0
    %595 = vmatpush2.msra.mxu0 0.0
    %596 = vmatprep.subr.mxu0 0.0
    %597 = vmatpush2.msra.mxu0 0.0
    %598 = vmatprep.subr.mxu0 0.0
    %599 = vmatpush2.msra.mxu0 0.0
    %600 = vmatprep.subr.mxu0 0.0
    %601 = vmatpush2.msra.mxu0 0.0
    %602 = vmatprep.subr.mxu0 0.0
    %603 = vmatpush2.msra.mxu0 0.0
    %604 = vmatprep.subr.mxu0 0.0
    %605 = vmatpush2.msra.mxu0 0.0
    %606 = vmatprep.mubr.f32.mxu0 0.0
    %607 = vmatmul.mubr.f32.gmra.mxu0 %v540
    %v608 = vpop.f32.mrf.mxu0
    %v609 = vadd.f32 %v538, %v608
    %v610 = vpop.f32.mrf.mxu0
    %611 = vdwg.mxu0
    %vm612 = vcmp.gt.f32.partialorder %v609, 0.0
    %v613 = vmul.f32 %v609, 0.01
    %v614 = vsel %vm612, %v609, %v613
    %615 = vst [vmem:[#allocation8] sm:$0x1] %v614
    // Predicated region
    $region26: #{tpu_custom_call.1} parent=1 // pred_check
      _
    $region27: #{tpu_custom_call.1} parent=1 // pred_check_branch
      %617 = sbr.rel (0) target = $region29
    $region28: #{tpu_custom_call.1} parent=1 // pred_region
      %s619 = ssub.s32 16, 16
      %620 = vsyncadd [#allocation4], %s619
      %s622 = sshll.u32 [#allocation8], 4
      %s623 = int_to_ptr.vmem [resolvable:$true] %s622
      %625 = dma.vmem_to_hbm [thread:$0]  %s623, 16, %s3, [#allocation4]
    $region29: #{tpu_custom_call.1} parent=1 // pred_fallthru
      _
    // Predicated region
    $region30: #{tpu_custom_call.1} parent=1 // pred_check
      _
    $region31: #{tpu_custom_call.1} parent=1 // pred_check_branch
      %627 = sbr.rel (0) target = $region33
    $region32: #{tpu_custom_call.1} parent=1 // pred_region
      %628 = dma.done [#allocation4], 16
    $region33: #{tpu_custom_call.1} parent=1 // pred_fallthru
      _
    %629 = vsyncpa [#allocation3], 1
    %630 = vsyncpa [#allocation6], 1
    %631 = vsyncpa [#allocation4], 1

</llo_original>
